<compile_context>
chip_gen: v7x
topology: tpu7x:2x2x1
jax: 0.10.0
libtpu: 0.0.40
codegen_flags: <defaults>
</compile_context>

<pallas_src>
import jax
import jax.numpy as jnp
from jax.experimental import pallas as pl
from jax.experimental.pallas import tpu as pltpu

IN_DIM = 8
OUT_DIM = 64


def _round_up(x, m):
    return ((x + m - 1) // m) * m


def _linear_sub_relu_kernel(x2_ref, wt_ref, b_ref, x1_ref, v2_ref, v3_ref):
    # v1 = x2 @ W^T   (MXU matmul, f32 accumulation)
    v1 = jnp.dot(x2_ref[...], wt_ref[...], preferred_element_type=jnp.float32)
    # Fused bias + x1 subtraction: v2 = v1 + (b - x1) == (x2 @ W^T + b) - x1
    v2 = v1 + (b_ref[...] - x1_ref[...])
    v2_ref[...] = v2.astype(v2_ref.dtype)
    v3_ref[...] = jnp.maximum(v2, 0.0).astype(v3_ref.dtype)


def _choose_tile(batch, tb_max):
    """Batch tile: multiple of 8, capped by tb_max (VMEM-aware), and split so
    the grid has >= 2 steps when the batch allows it (v7x megacore)."""
    tb = min(tb_max, _round_up(batch, 8))
    if batch > 8 and pl.cdiv(batch, tb) == 1:
        tb = min(tb, _round_up(pl.cdiv(batch, 2), 8))
    return tb


def linear_sub_relu(x1, x2, w_t, b, *, tb_max=2048):
    """x1: (B, 64), x2: (B, 8), w_t: (8, 64), b: (1, 64) -> (v3, v2), each (B, 64)."""
    B = x2.shape[0]
    out_dim = w_t.shape[1]

    tb = _choose_tile(B, tb_max)
    grid = (pl.cdiv(B, tb),)  # partial last block is masked; no jnp.pad copies

    bytes_accessed = 4 * (B * IN_DIM            # x2
                          + IN_DIM * out_dim    # W^T (resident, DMA'd once)
                          + out_dim             # bias
                          + B * out_dim         # x1
                          + 2 * B * out_dim)    # v2 + v3 outputs

    v2, v3 = pl.pallas_call(
        _linear_sub_relu_kernel,
        out_shape=(jax.ShapeDtypeStruct((B, out_dim), jnp.float32),
                   jax.ShapeDtypeStruct((B, out_dim), jnp.float32)),
        grid_spec=pltpu.PrefetchScalarGridSpec(
            num_scalar_prefetch=0,
            grid=grid,
            in_specs=[
                pl.BlockSpec((tb, IN_DIM), lambda i: (i, 0)),       # x2 tile
                pl.BlockSpec((IN_DIM, out_dim), lambda i: (0, 0)),  # W^T resident
                pl.BlockSpec((1, out_dim), lambda i: (0, 0)),       # bias resident
                pl.BlockSpec((tb, out_dim), lambda i: (i, 0)),      # x1 tile
            ],
            out_specs=[
                pl.BlockSpec((tb, out_dim), lambda i: (i, 0)),      # v2 tile
                pl.BlockSpec((tb, out_dim), lambda i: (i, 0)),      # v3 tile
            ],
        ),
        compiler_params=pltpu.CompilerParams(
            dimension_semantics=("parallel",),
            vmem_limit_bytes=28 * 1024 * 1024),
        cost_estimate=pl.CostEstimate(
            flops=2 * B * IN_DIM * out_dim,
            transcendentals=0,
            bytes_accessed=bytes_accessed),
    )(x2, w_t, b, x1)

    return v3, v2


if __name__ == "__main__":
    key = jax.random.PRNGKey(0)
    k_w, k_b, k_x1, k_x2 = jax.random.split(key, 4)

    batch = 4  # small example batch; kernel tiles arbitrary B with a masked tail

    # Deterministic parameter init (matches PyTorch Linear's uniform(-1/sqrt(in), 1/sqrt(in)) range).
    bound = 1.0 / jnp.sqrt(jnp.float32(IN_DIM))
    w = jax.random.uniform(k_w, (OUT_DIM, IN_DIM), jnp.float32, -bound, bound)
    b = jax.random.uniform(k_b, (1, OUT_DIM), jnp.float32, -bound, bound)
    w_t = w.T  # (8, 64), pre-transposed for x @ W^T

    # Example inputs.
    x1 = jax.random.normal(k_x1, (batch, OUT_DIM), jnp.float32)  # (B, 64)
    x2 = jax.random.normal(k_x2, (batch, IN_DIM), jnp.float32)   # (B, 8)

    v3, v2 = linear_sub_relu(x1, x2, w_t, b)
    jax.block_until_ready((v3, v2))

    # Reference check in plain JAX.
    v1_ref = x2 @ w.T + b
    v2_ref = v1_ref - x1
    v3_ref = jnp.maximum(v2_ref, 0.0)
    assert v2.shape == (batch, OUT_DIM) and v3.shape == (batch, OUT_DIM)
    assert jnp.allclose(v2, v2_ref, atol=1e-5), "v2 mismatch"
    assert jnp.allclose(v3, v3_ref, atol=1e-5), "v3 mismatch"

    print("KERNEL_OK")
</pallas_src>

<mosaic_0001>
module attributes {stable_mosaic.version = 11 : i64} {
  func.func @_linear_sub_relu_kernel(%arg0: i32, %arg1: memref<8x8xf32, #tpu.memory_space<vmem>>, %arg2: memref<8x64xf32, #tpu.memory_space<vmem>>, %arg3: memref<1x64xf32, #tpu.memory_space<vmem>>, %arg4: memref<8x64xf32, #tpu.memory_space<vmem>>, %arg5: memref<8x64xf32, #tpu.memory_space<vmem>>, %arg6: memref<8x64xf32, #tpu.memory_space<vmem>>) attributes {dimension_semantics = [#tpu.dimension_semantics<parallel>], iteration_bounds = array<i64: 1>, scalar_prefetch = 0 : i64, scratch_operands = 0 : i64, tpu.core_type = #tpu.core_type<tc>, window_params = [{transform_indices = @transform_0, window_bounds = array<i64: 8, 8>}, {pipeline_mode = #tpu.pipeline_mode<synchronous>, transform_indices = @transform_1, window_bounds = array<i64: 8, 64>}, {pipeline_mode = #tpu.pipeline_mode<synchronous>, transform_indices = @transform_2, window_bounds = array<i64: 1, 64>}, {transform_indices = @transform_3, window_bounds = array<i64: 8, 64>}, {transform_indices = @transform_4, window_bounds = array<i64: 8, 64>}, {transform_indices = @transform_5, window_bounds = array<i64: 8, 64>}]} {
    %c0 = arith.constant 0 : index
    %c0_0 = arith.constant 0 : index
    %0 = vector.load %arg1[%c0, %c0_0] : memref<8x8xf32, #tpu.memory_space<vmem>>, vector<8x8xf32>
    %c0_1 = arith.constant 0 : index
    %c0_2 = arith.constant 0 : index
    %1 = vector.load %arg2[%c0_1, %c0_2] : memref<8x64xf32, #tpu.memory_space<vmem>>, vector<8x64xf32>
    %cst = arith.constant dense<0.000000e+00> : vector<8x64xf32>
    %2 = tpu.matmul %0, %1, %cst {dimension_numbers = #tpu.dot_dimension_numbers<[1], [0], [0], [1], [0, 0, 1, 1], [], []>} : vector<8x8xf32>, vector<8x64xf32>, vector<8x64xf32> -> vector<8x64xf32>
    %c0_3 = arith.constant 0 : index
    %c0_4 = arith.constant 0 : index
    %3 = vector.load %arg3[%c0_3, %c0_4] : memref<1x64xf32, #tpu.memory_space<vmem>>, vector<1x64xf32>
    %c0_5 = arith.constant 0 : index
    %c0_6 = arith.constant 0 : index
    %4 = vector.load %arg4[%c0_5, %c0_6] : memref<8x64xf32, #tpu.memory_space<vmem>>, vector<8x64xf32>
    %5 = vector.broadcast %3 : vector<1x64xf32> to vector<8x64xf32>
    %6 = arith.subf %5, %4 : vector<8x64xf32>
    %7 = arith.addf %2, %6 : vector<8x64xf32>
    %c0_7 = arith.constant 0 : index
    %c0_8 = arith.constant 0 : index
    %8 = vector.load %arg5[%c0_7, %c0_8] : memref<8x64xf32, #tpu.memory_space<vmem>>, vector<8x64xf32>
    tpu.vector_store %arg5[%c0_7, %c0_8], %7 {strides = array<i32>} : memref<8x64xf32, #tpu.memory_space<vmem>>, vector<8x64xf32>,
    %cst_9 = arith.constant 0.000000e+00 : f32
    %9 = vector.broadcast %cst_9 : f32 to vector<8x64xf32>
    %10 = arith.maximumf %7, %9 : vector<8x64xf32>
    %c0_10 = arith.constant 0 : index
    %c0_11 = arith.constant 0 : index
    %11 = vector.load %arg6[%c0_10, %c0_11] : memref<8x64xf32, #tpu.memory_space<vmem>>, vector<8x64xf32>
    tpu.vector_store %arg6[%c0_10, %c0_11], %10 {strides = array<i32>} : memref<8x64xf32, #tpu.memory_space<vmem>>, vector<8x64xf32>,
    return
  }
  func.func @transform_0(%arg0: i32) -> (i32, i32) {
    %c0_i32 = arith.constant 0 : i32
    %c0_i32_0 = arith.constant 0 : i32
    return %arg0, %c0_i32 : i32, i32
  }
  func.func @transform_1(%arg0: i32) -> (i32, i32) {
    %c0_i32 = arith.constant 0 : i32
    %c0_i32_0 = arith.constant 0 : i32
    %c0_i32_1 = arith.constant 0 : i32
    return %c0_i32, %c0_i32_0 : i32, i32
  }
  func.func @transform_2(%arg0: i32) -> (i32, i32) {
    %c0_i32 = arith.constant 0 : i32
    %c0_i32_0 = arith.constant 0 : i32
    %c0_i32_1 = arith.constant 0 : i32
    return %c0_i32, %c0_i32_0 : i32, i32
  }
  func.func @transform_3(%arg0: i32) -> (i32, i32) {
    %c0_i32 = arith.constant 0 : i32
    %c0_i32_0 = arith.constant 0 : i32
    return %arg0, %c0_i32 : i32, i32
  }
  func.func @transform_4(%arg0: i32) -> (i32, i32) {
    %c0_i32 = arith.constant 0 : i32
    %c0_i32_0 = arith.constant 0 : i32
    return %arg0, %c0_i32 : i32, i32
  }
  func.func @transform_5(%arg0: i32) -> (i32, i32) {
    %c0_i32 = arith.constant 0 : i32
    %c0_i32_0 = arith.constant 0 : i32
    return %arg0, %c0_i32 : i32, i32
  }
}

</mosaic_0001>

<llo_original>
// kernel: tpu_custom_call.1
$region0: #{tpu_custom_call.1}
  #allocation0 [shape = 'u32[]', space=smem, size = 0x4, offset = 0x4, fixed_abs, tag = 'smem constant byte address 0x4 - core index']
  #allocation1 [shape = 'u32[144,128]{1,0:T(1,128)}', space=vmem, size = 0x12000, scoped, tag = 'internal scratch']
  %s0 = inlined_call_operand.hbm [shape: f32[4,8], index: 0, kind: input, shape index: {}]
  %s1 = inlined_call_operand.hbm [shape: f32[8,64], index: 1, kind: input, shape index: {}]
  %s2 = inlined_call_operand.vmem [shape: f32[1,64], index: 2, kind: input, shape index: {}]
  %s3 = inlined_call_operand.vmem [shape: f32[4,64], index: 3, kind: input, shape index: {}]
  %s4 = inlined_call_operand.hbm [shape: f32[4,64], index: 4, kind: output, shape index: {0}]
  %s5 = inlined_call_operand.hbm [shape: f32[4,64], index: 5, kind: output, shape index: {1}]
  %6 = xla_tuple %s4, %s5
  %s7 = sld [smem:[#allocation0]]
  $region42: #{tpu_custom_call.1} parent=0
    _
  %s9 = ssub.s32 1, %s7
  %s10 = scalar_select 0, %s9, %s7
  $region1: #{tpu_custom_call.1} parent=0
    #allocation2 [shape = 'u8[4096]{0}', space=vmem, size = 0x1000, scoped, tag = 'input window, operand 0, single buffered']
    #allocation3 [shape = 's32[1]{0}', space=sflag, size = 0x4, scoped, tag = 'scoped memory for tpu_custom_call.1']
    #allocation4 [shape = 's32[1]{0}', space=sflag, size = 0x4, scoped, tag = 'scoped memory for tpu_custom_call.1']
    #allocation5 [shape = 'u8[4096]{0}', space=vmem, size = 0x1000, scoped, tag = 'input window, operand 1, single buffered']
    #allocation6 [shape = 's32[1]{0}', space=sflag, size = 0x4, scoped, tag = 'scoped memory for tpu_custom_call.1']
    #allocation7 [shape = 'u8[4096]{0}', space=vmem, size = 0x1000, scoped, tag = 'output window, operand 0, single buffered']
    #allocation8 [shape = 'u8[4096]{0}', space=vmem, size = 0x1000, scoped, tag = 'output window, operand 1, single buffered']
    #allocation9 [shape = 's32[1]{0}', space=sflag, size = 0x4, scoped, tag = 'scoped memory for tpu_custom_call.1']
    %11 = vsyncpa [#allocation3], 0
    %12 = vsyncpa [#allocation6], 0
    %13 = vsyncpa [#allocation4], 0
    %14 = vsyncpa [#allocation9], 0
    // Predicated region
    $region2: #{tpu_custom_call.1} parent=1 // pred_check
      _
    $region3: #{tpu_custom_call.1} parent=1 // pred_check_branch
      %16 = sbr.rel (0) target = $region5
    $region4: #{tpu_custom_call.1} parent=1 // pred_region
      %s18 = ssub.s32 128, 64
      %19 = vsyncadd [#allocation3], %s18
      %s20 = sshll.u32 [#allocation2], 4
      %s21 = int_to_ptr.vmem [resolvable:$true] %s20
      %26 = dma.hbm_to_vmem [thread:$0]  %s0, 64, %s21, [#allocation3], 64, 64, 4
    $region5: #{tpu_custom_call.1} parent=1 // pred_fallthru
      _
    // Predicated region
    $region6: #{tpu_custom_call.1} parent=1 // pred_check
      _
    $region7: #{tpu_custom_call.1} parent=1 // pred_check_branch
      %28 = sbr.rel (0) target = $region9
    $region8: #{tpu_custom_call.1} parent=1 // pred_region
      %s30 = ssub.s32 128, 128
      %31 = vsyncadd [#allocation6], %s30
      %s33 = sshll.u32 [#allocation5], 4
      %s34 = int_to_ptr.vmem [resolvable:$true] %s33
      %36 = dma.hbm_to_vmem [thread:$0]  %s1, 128, %s34, [#allocation6]
    $region9: #{tpu_custom_call.1} parent=1 // pred_fallthru
      _
    // Predicated region
    $region10: #{tpu_custom_call.1} parent=1 // pred_check
      _
    $region11: #{tpu_custom_call.1} parent=1 // pred_check_branch
      %38 = sbr.rel (0) target = $region13
    $region12: #{tpu_custom_call.1} parent=1 // pred_region
      _
    $region13: #{tpu_custom_call.1} parent=1 // pred_fallthru
      _
    // Predicated region
    $region14: #{tpu_custom_call.1} parent=1 // pred_check
      _
    $region15: #{tpu_custom_call.1} parent=1 // pred_check_branch
      %40 = sbr.rel (0) target = $region17
    $region16: #{tpu_custom_call.1} parent=1 // pred_region
      _
    $region17: #{tpu_custom_call.1} parent=1 // pred_fallthru
      _
    // Predicated region
    $region18: #{tpu_custom_call.1} parent=1 // pred_check
      _
    $region19: #{tpu_custom_call.1} parent=1 // pred_check_branch
      %42 = sbr.rel (0) target = $region21
    $region20: #{tpu_custom_call.1} parent=1 // pred_region
      %43 = dma.done [#allocation3], 128
    $region21: #{tpu_custom_call.1} parent=1 // pred_fallthru
      _
    // Predicated region
    $region22: #{tpu_custom_call.1} parent=1 // pred_check
      _
    $region23: #{tpu_custom_call.1} parent=1 // pred_check_branch
      %45 = sbr.rel (0) target = $region25
    $region24: #{tpu_custom_call.1} parent=1 // pred_region
      %46 = dma.done [#allocation6], 128
    $region25: #{tpu_custom_call.1} parent=1 // pred_fallthru
      _
    %v47 = vld [vmem:[#allocation2] sm:$0xff]
    %v48 = vld [vmem:[#allocation5] sm:$0xff]
    %v49 = vld [vmem:[%s2] sm:$0x1]
    %v50 = vld [vmem:[%s3] sm:$0xff]
    %v52 = vlaneseq
    %v53 = vshrl.u32 %v52, 7
    %v54 = vsub.s32 0, %v53
    %v55 = vrot.slane %v49, %v54
    %v57 = vsub.f32 %v55, %v50
    %vm58 = vcmask 64512
    %v60 = vsel %vm58, %v47, 0
    %62 = vmatprep.subr.mxu0 0.0
    %63 = vmatpush1.msra.mxu0 %v48
    %64 = vmatprep.subr.mxu0 0.0
    %65 = vmatpush1.msra.mxu0 0.0
    %66 = vmatprep.subr.mxu0 0.0
    %67 = vmatpush1.msra.mxu0 0.0
    %68 = vmatprep.subr.mxu0 0.0
    %69 = vmatpush1.msra.mxu0 0.0
    %70 = vmatprep.subr.mxu0 0.0
    %71 = vmatpush1.msra.mxu0 0.0
    %72 = vmatprep.subr.mxu0 0.0
    %73 = vmatpush1.msra.mxu0 0.0
    %74 = vmatprep.subr.mxu0 0.0
    %75 = vmatpush1.msra.mxu0 0.0
    %76 = vmatprep.subr.mxu0 0.0
    %77 = vmatpush1.msra.mxu0 0.0
    %78 = vmatprep.subr.mxu0 0.0
    %79 = vmatpush1.msra.mxu0 0.0
    %80 = vmatprep.subr.mxu0 0.0
    %81 = vmatpush1.msra.mxu0 0.0
    %82 = vmatprep.subr.mxu0 0.0
    %83 = vmatpush1.msra.mxu0 0.0
    %84 = vmatprep.subr.mxu0 0.0
    %85 = vmatpush1.msra.mxu0 0.0
    %86 = vmatprep.subr.mxu0 0.0
    %87 = vmatpush1.msra.mxu0 0.0
    %88 = vmatprep.subr.mxu0 0.0
    %89 = vmatpush1.msra.mxu0 0.0
    %90 = vmatprep.subr.mxu0 0.0
    %91 = vmatpush1.msra.mxu0 0.0
    %92 = vmatprep.subr.mxu0 0.0
    %93 = vmatpush1.msra.mxu0 0.0
    %94 = vmatprep.subr.mxu0 0.0
    %95 = vmatpush1.msra.mxu0 0.0
    %96 = vmatprep.subr.mxu0 0.0
    %97 = vmatpush1.msra.mxu0 0.0
    %98 = vmatprep.subr.mxu0 0.0
    %99 = vmatpush1.msra.mxu0 0.0
    %100 = vmatprep.subr.mxu0 0.0
    %101 = vmatpush1.msra.mxu0 0.0
    %102 = vmatprep.subr.mxu0 0.0
    %103 = vmatpush1.msra.mxu0 0.0
    %104 = vmatprep.subr.mxu0 0.0
    %105 = vmatpush1.msra.mxu0 0.0
    %106 = vmatprep.subr.mxu0 0.0
    %107 = vmatpush1.msra.mxu0 0.0
    %108 = vmatprep.subr.mxu0 0.0
    %109 = vmatpush1.msra.mxu0 0.0
    %110 = vmatprep.subr.mxu0 0.0
    %111 = vmatpush1.msra.mxu0 0.0
    %112 = vmatprep.subr.mxu0 0.0
    %113 = vmatpush1.msra.mxu0 0.0
    %114 = vmatprep.subr.mxu0 0.0
    %115 = vmatpush1.msra.mxu0 0.0
    %116 = vmatprep.subr.mxu0 0.0
    %117 = vmatpush1.msra.mxu0 0.0
    %118 = vmatprep.subr.mxu0 0.0
    %119 = vmatpush1.msra.mxu0 0.0
    %120 = vmatprep.subr.mxu0 0.0
    %121 = vmatpush1.msra.mxu0 0.0
    %122 = vmatprep.subr.mxu0 0.0
    %123 = vmatpush1.msra.mxu0 0.0
    %124 = vmatprep.subr.mxu0 0.0
    %125 = vmatpush1.msra.mxu0 0.0
    %126 = vmatprep.mubr.f32.mxu0 0.0
    %127 = vmatmul.mubr.f32.gmra.mrb[0].mxu0 %v60
    %v128 = vpop.f32.mrb[0].mxu0
    %v129 = vadd.f32 %v57, %v128
    %v130 = vpop.f32.mrb[0].mxu0
    %131 = vdwg.mxu0
    %vm132 = vcmask 523264
    %133 = vst.msk [vmem:[#allocation7] sm:$0xff] %vm132, %v129
    %v134 = vmax.f32 %v129, 0.0
    %135 = vst.msk [vmem:[#allocation8] sm:$0xff] %vm132, %v134
    // Predicated region
    $region26: #{tpu_custom_call.1} parent=1 // pred_check
      _
    $region27: #{tpu_custom_call.1} parent=1 // pred_check_branch
      %137 = sbr.rel (0) target = $region29
    $region28: #{tpu_custom_call.1} parent=1 // pred_region
      %s139 = ssub.s32 128, 64
      %140 = vsyncadd [#allocation4], %s139
      %s141 = sshll.u32 [#allocation7], 4
      %s142 = int_to_ptr.vmem [resolvable:$true] %s141
      %147 = dma.vmem_to_hbm [thread:$0]  %s142, 64, %s4, [#allocation4], 64, 64, 4
    $region29: #{tpu_custom_call.1} parent=1 // pred_fallthru
      _
    // Predicated region
    $region30: #{tpu_custom_call.1} parent=1 // pred_check
      _
    $region31: #{tpu_custom_call.1} parent=1 // pred_check_branch
      %149 = sbr.rel (0) target = $region33
    $region32: #{tpu_custom_call.1} parent=1 // pred_region
      %s151 = ssub.s32 128, 64
      %152 = vsyncadd [#allocation9], %s151
      %s153 = sshll.u32 [#allocation8], 4
      %s154 = int_to_ptr.vmem [resolvable:$true] %s153
      %159 = dma.vmem_to_hbm [thread:$0]  %s154, 64, %s5, [#allocation9], 64, 64, 4
    $region33: #{tpu_custom_call.1} parent=1 // pred_fallthru
      _
    // Predicated region
    $region34: #{tpu_custom_call.1} parent=1 // pred_check
      _
    $region35: #{tpu_custom_call.1} parent=1 // pred_check_branch
      %161 = sbr.rel (0) target = $region37
    $region36: #{tpu_custom_call.1} parent=1 // pred_region
      %162 = dma.done [#allocation4], 128
    $region37: #{tpu_custom_call.1} parent=1 // pred_fallthru
      _
    // Predicated region
    $region38: #{tpu_custom_call.1} parent=1 // pred_check
      _
    $region39: #{tpu_custom_call.1} parent=1 // pred_check_branch
      %164 = sbr.rel (0) target = $region41
    $region40: #{tpu_custom_call.1} parent=1 // pred_region
      %165 = dma.done [#allocation9], 128
    $region41: #{tpu_custom_call.1} parent=1 // pred_fallthru
      _
    %166 = vsyncpa [#allocation3], 1
    %167 = vsyncpa [#allocation6], 1
    %168 = vsyncpa [#allocation4], 1
    %169 = vsyncpa [#allocation9], 1

</llo_original>
